<compile_context>
chip_gen: v5e
topology: v5e:2x2
jax: 0.10.0
libtpu: 0.0.40
codegen_flags: <defaults>
</compile_context>

<pallas_src>
import functools
import math

import jax
import jax.numpy as jnp
from jax.experimental import pallas as pl
from jax.experimental.pallas import tpu as pltpu


def _round_up(x, m):
    return ((x + m - 1) // m) * m


def _arnet_kernel(n_layers, x_ref, *refs):
    """Fused ARNet MLP forward on pack-widened rows.

    refs layout: w0, b0, w1, b1, ..., w_{L-1}, b_{L-1}, feat_out_ref, out_ref
    Hidden layers use ReLU, the last layer uses Sigmoid.  Matmuls run in the
    weights' dtype (bf16) with f32 accumulation on the MXU; bias add / ReLU /
    sigmoid stay in f32 (VPU / EUP); inter-layer activations travel in bf16.
    """
    wb_refs = refs[: 2 * n_layers]
    feat_ref = refs[2 * n_layers]
    out_ref = refs[2 * n_layers + 1]

    h = x_ref[...]                                        # compute_dtype (bf16)
    for i in range(n_layers):
        w = wb_refs[2 * i][...]
        b = wb_refs[2 * i + 1][...]                       # (1, pack*dim_i), f32
        acc = jnp.dot(h, w, preferred_element_type=jnp.float32) + b
        last = i == n_layers - 1
        act = jax.nn.sigmoid(acc) if last else jnp.maximum(acc, 0.0)
        if i == 0:
            feat_ref[...] = act.astype(feat_ref.dtype)    # x_features (post-act)
        if last:
            out_ref[...] = act.astype(out_ref.dtype)
        else:
            h = act.astype(w.dtype)                       # bf16 for next matmul
        # TODO(synk): nn.Dropout between layers is identity in eval mode; training-mode
        # stochastic dropout (Bernoulli mask, and InstanceDropout without rescale) is
        # not implemented here.


def make_arnet_forward(weights, biases, *, pack=8, wide_tile=1024,
                       compute_dtype=jnp.bfloat16, feat_dtype=jnp.float32):
    """Builds a jitted ARNet forward.  Expanded (kron) weights are computed once.

    weights[i]: (in_dim_i, out_dim_i), biases[i]: (out_dim_i,)
    Returned fn maps x:(N, embed) -> (x_features:(N, dims[0]), x_out:(N, dims[-1])),
    matching the eval-mode PyTorch forward.
    Set feat_dtype=jnp.bfloat16 to halve the largest HBM writeback stream if the
    consumer tolerates bf16 features (numerically they are bf16-quality anyway).
    """
    n_layers = len(weights)
    embed = int(weights[0].shape[0])
    dims = [int(w.shape[1]) for w in weights]

    # One-time block-diagonal expansion (kron) + bias tiling; closed over below.
    eye = jnp.eye(pack, dtype=jnp.float32)
    ws_big = tuple(jnp.kron(eye, w.astype(jnp.float32)).astype(compute_dtype)
                   for w in weights)
    bs_big = tuple(jnp.tile(b.astype(jnp.float32), pack).reshape(1, -1)
                   for b in biases)

    kernel = functools.partial(_arnet_kernel, n_layers)
    cd_bytes = jnp.dtype(compute_dtype).itemsize
    fd_bytes = jnp.dtype(feat_dtype).itemsize

    def _forward(x, ws, bs):
        N = x.shape[0]
        n_wide = -(-N // pack)

        # --- tile-size derivation against a VMEM budget safe on v5e/v6e/v7x ---
        # Per wide-row: double-buffered x / feat / out blocks + per-layer f32 acc
        # and bf16 activation intermediates.
        bytes_per_wide_row = (
            2 * pack * embed * cd_bytes
            + 2 * pack * dims[0] * fd_bytes
            + 2 * pack * dims[-1] * 4
            + sum(pack * d * (4 + cd_bytes) for d in dims)
        )
        weight_bytes = (sum(int(w.size) * cd_bytes for w in ws)
                        + sum(int(b.size) * 4 for b in bs)) * 2  # default 2 bufs
        tile_budget = (40 << 20) - weight_bytes      # ~40 MiB ceiling, all gens
        wt = min(wide_tile, max(16, tile_budget // max(1, bytes_per_wide_row)))
        wt = max(16, min(wt, _round_up(n_wide, 16)))
        wt = (wt // 16) * 16                         # bf16 sublane packing
        n_wide_pad = _round_up(n_wide, wt)
        # Keep >= 2 grid steps when there is enough work: v7x has 2 TensorCores
        # and the ("parallel",) axis is what shards across them.
        if n_wide_pad // wt < 2 and wt > 16:
            half = max(16, _round_up(-(-n_wide // 2), 16))
            if half < wt:
                wt = half
                n_wide_pad = _round_up(n_wide, wt)
        grid = (n_wide_pad // wt,)
        n_pad = n_wide_pad * pack

        # Cast to bf16 BEFORE padding: the padded intermediate is half the size
        # and XLA fuses pad+reshape under this jit.
        x_c = x.astype(compute_dtype)
        if n_pad != N:
            x_c = jnp.pad(x_c, ((0, n_pad - N), (0, 0)))
        x_w = x_c.reshape(n_wide_pad, pack * embed)

        # Row-tiled grid over wide rows; every weight/bias is a full-array block
        # with a constant index_map, so it is DMA'd once and stays VMEM-resident
        # across grid steps.
        in_specs = [pl.BlockSpec((wt, pack * embed), lambda i: (i, 0))]
        args = [x_w]
        for wb, bb in zip(ws, bs):
            in_specs.append(pl.BlockSpec(wb.shape, lambda i: (0, 0)))
            in_specs.append(pl.BlockSpec(bb.shape, lambda i: (0, 0)))
            args += [wb, bb]

        out_specs = [
            pl.BlockSpec((wt, pack * dims[0]), lambda i: (i, 0)),
            pl.BlockSpec((wt, pack * dims[-1]), lambda i: (i, 0)),
        ]
        out_shape = [
            jax.ShapeDtypeStruct((n_wide_pad, pack * dims[0]), feat_dtype),
            jax.ShapeDtypeStruct((n_wide_pad, pack * dims[-1]), jnp.float32),
        ]

        flops = 2 * n_wide_pad * sum(int(w.shape[0]) * int(w.shape[1]) for w in ws)
        bytes_accessed = (
            x_w.size * cd_bytes
            + sum(int(w.size) * cd_bytes for w in ws)
            + sum(int(b.size) * 4 for b in bs)
            + n_wide_pad * pack * (dims[0] * fd_bytes + dims[-1] * 4)
        )
        cost = pl.CostEstimate(flops=int(flops),
                               transcendentals=int(n_wide_pad * pack * dims[-1]),
                               bytes_accessed=int(bytes_accessed))

        est_vmem = weight_bytes + wt * bytes_per_wide_row
        vmem_limit = int(min(48 << 20, max(32 << 20, 2 * est_vmem)))

        feat_w, out_w = pl.pallas_call(
            kernel,
            out_shape=out_shape,
            grid=grid,
            in_specs=in_specs,
            out_specs=out_specs,
            compiler_params=pltpu.CompilerParams(
                dimension_semantics=("parallel",),
                vmem_limit_bytes=vmem_limit),
            cost_estimate=cost,
        )(*args)

        # Zero-copy row-major reshapes back to PyTorch layout; drop padding rows.
        feat = feat_w.reshape(n_pad, dims[0])[:N]
        out = out_w.reshape(n_pad, dims[-1])[:N]
        return feat, out

    fwd = jax.jit(_forward)

    def forward(x):
        return fwd(x, ws_big, bs_big)

    return forward


def xavier_uniform(key, fan_in, fan_out, dtype=jnp.float32):
    bound = math.sqrt(6.0 / (fan_in + fan_out))
    return jax.random.uniform(key, (fan_in, fan_out), dtype=dtype,
                              minval=-bound, maxval=bound)


def make_arnet_params(key, embed_dim, dims):
    """Deterministic Xavier-uniform weights, zero biases (matches _init_weights)."""
    weights, biases = [], []
    in_dim = embed_dim
    for d in dims:
        key, sub = jax.random.split(key)
        weights.append(xavier_uniform(sub, in_dim, d))
        biases.append(jnp.zeros((d,), jnp.float32))
        in_dim = d
    return weights, biases


def arnet_reference(x, weights, biases, compute_dtype=None):
    """Pure-JAX reference of the eval-mode PyTorch forward.

    If compute_dtype is given, matmul operands are cast to it (mirrors the
    kernel's bf16 MXU inputs) with f32 accumulation.
    """
    h = x
    feat = None
    for i, (w, b) in enumerate(zip(weights, biases)):
        if compute_dtype is not None:
            z = jnp.dot(h.astype(compute_dtype), w.astype(compute_dtype),
                        preferred_element_type=jnp.float32) + b
        else:
            z = h @ w + b
        h = jnp.maximum(z, 0.0) if i != len(weights) - 1 else jax.nn.sigmoid(z)
        if i == 0:
            feat = h
    return feat, h


if __name__ == "__main__":
    embed_dim = 16
    dims = [32, 16, 1]          # self.dim from the PyTorch module
    batch, seq = 2, 8           # MIL-style input: (batch, instances, embed_dim)

    key = jax.random.PRNGKey(0)
    k_x, k_p = jax.random.split(key)

    x = jax.random.normal(k_x, (batch, seq, embed_dim), jnp.float32)
    weights, biases = make_arnet_params(k_p, embed_dim, dims)

    # Flatten leading dims: Linear acts on the last axis only.
    x2d = x.reshape(-1, embed_dim)

    arnet_fwd = make_arnet_forward(weights, biases)   # kron expansion happens once
    feat, out = arnet_fwd(x2d)
    feat = feat.reshape(batch, seq, dims[0])
    out = out.reshape(batch, seq, dims[-1])
    jax.block_until_ready((feat, out))

    # Correctness: against a bf16-matmul-mirrored reference (tight) and the pure
    # f32 reference (loose, bounds the bf16 input quantization error).
    feat_bf, out_bf = arnet_reference(x2d, weights, biases,
                                      compute_dtype=jnp.bfloat16)
    feat_f32, out_f32 = arnet_reference(x2d, weights, biases)
    feat_bf = feat_bf.reshape(batch, seq, dims[0])
    out_bf = out_bf.reshape(batch, seq, dims[-1])
    feat_f32 = feat_f32.reshape(batch, seq, dims[0])
    out_f32 = out_f32.reshape(batch, seq, dims[-1])

    assert jnp.allclose(feat, feat_bf, atol=5e-3, rtol=5e-3)
    assert jnp.allclose(out, out_bf, atol=5e-3, rtol=5e-3)
    assert jnp.allclose(feat, feat_f32, atol=3e-2, rtol=3e-2)
    assert jnp.allclose(out, out_f32, atol=3e-2, rtol=3e-2)

    print("KERNEL_OK")
</pallas_src>

<mosaic_0001>
module attributes {stable_mosaic.version = 11 : i64} {
  func.func @_arnet_kernel(%arg0: i32, %arg1: memref<16x128xbf16, #tpu.memory_space<vmem>>, %arg2: memref<128x256xbf16, #tpu.memory_space<vmem>>, %arg3: memref<1x256xf32, #tpu.memory_space<vmem>>, %arg4: memref<256x128xbf16, #tpu.memory_space<vmem>>, %arg5: memref<1x128xf32, #tpu.memory_space<vmem>>, %arg6: memref<128x8xbf16, #tpu.memory_space<vmem>>, %arg7: memref<1x8xf32, #tpu.memory_space<vmem>>, %arg8: memref<16x256xf32, #tpu.memory_space<vmem>>, %arg9: memref<16x8xf32, #tpu.memory_space<vmem>>) attributes {dimension_semantics = [#tpu.dimension_semantics<parallel>], iteration_bounds = array<i64: 1>, scalar_prefetch = 0 : i64, scratch_operands = 0 : i64, tpu.core_type = #tpu.core_type<tc>, window_params = [{transform_indices = @transform_0, window_bounds = array<i64: 16, 128>}, {pipeline_mode = #tpu.pipeline_mode<synchronous>, transform_indices = @transform_1, window_bounds = array<i64: 128, 256>}, {pipeline_mode = #tpu.pipeline_mode<synchronous>, transform_indices = @transform_2, window_bounds = array<i64: 1, 256>}, {pipeline_mode = #tpu.pipeline_mode<synchronous>, transform_indices = @transform_3, window_bounds = array<i64: 256, 128>}, {pipeline_mode = #tpu.pipeline_mode<synchronous>, transform_indices = @transform_4, window_bounds = array<i64: 1, 128>}, {pipeline_mode = #tpu.pipeline_mode<synchronous>, transform_indices = @transform_5, window_bounds = array<i64: 128, 8>}, {pipeline_mode = #tpu.pipeline_mode<synchronous>, transform_indices = @transform_6, window_bounds = array<i64: 1, 8>}, {transform_indices = @transform_7, window_bounds = array<i64: 16, 256>}, {transform_indices = @transform_8, window_bounds = array<i64: 16, 8>}]} {
    %c0 = arith.constant 0 : index
    %c0_0 = arith.constant 0 : index
    %0 = vector.load %arg1[%c0, %c0_0] : memref<16x128xbf16, #tpu.memory_space<vmem>>, vector<16x128xbf16>
    %c0_1 = arith.constant 0 : index
    %c0_2 = arith.constant 0 : index
    %1 = vector.load %arg2[%c0_1, %c0_2] : memref<128x256xbf16, #tpu.memory_space<vmem>>, vector<128x256xbf16>
    %c0_3 = arith.constant 0 : index
    %c0_4 = arith.constant 0 : index
    %2 = vector.load %arg3[%c0_3, %c0_4] : memref<1x256xf32, #tpu.memory_space<vmem>>, vector<1x256xf32>
    %cst = arith.constant dense<0.000000e+00> : vector<16x256xf32>
    %3 = tpu.matmul %0, %1, %cst {dimension_numbers = #tpu.dot_dimension_numbers<[1], [0], [0], [1], [0, 0, 1, 1], [], []>} : vector<16x128xbf16>, vector<128x256xbf16>, vector<16x256xf32> -> vector<16x256xf32>
    %4 = vector.broadcast %2 : vector<1x256xf32> to vector<16x256xf32>
    %5 = arith.addf %3, %4 : vector<16x256xf32>
    %cst_5 = arith.constant 0.000000e+00 : f32
    %6 = vector.broadcast %cst_5 : f32 to vector<16x256xf32>
    %7 = arith.maximumf %5, %6 : vector<16x256xf32>
    %c0_6 = arith.constant 0 : index
    %c0_7 = arith.constant 0 : index
    %8 = vector.load %arg8[%c0_6, %c0_7] : memref<16x256xf32, #tpu.memory_space<vmem>>, vector<16x256xf32>
    tpu.vector_store %arg8[%c0_6, %c0_7], %7 {strides = array<i32>} : memref<16x256xf32, #tpu.memory_space<vmem>>, vector<16x256xf32>,
    %9 = arith.truncf %7 : vector<16x256xf32> to vector<16x256xbf16>
    %c0_8 = arith.constant 0 : index
    %c0_9 = arith.constant 0 : index
    %10 = vector.load %arg4[%c0_8, %c0_9] : memref<256x128xbf16, #tpu.memory_space<vmem>>, vector<256x128xbf16>
    %c0_10 = arith.constant 0 : index
    %c0_11 = arith.constant 0 : index
    %11 = vector.load %arg5[%c0_10, %c0_11] : memref<1x128xf32, #tpu.memory_space<vmem>>, vector<1x128xf32>
    %cst_12 = arith.constant dense<0.000000e+00> : vector<16x128xf32>
    %12 = tpu.matmul %9, %10, %cst_12 {dimension_numbers = #tpu.dot_dimension_numbers<[1], [0], [0], [1], [0, 0, 1, 1], [], []>} : vector<16x256xbf16>, vector<256x128xbf16>, vector<16x128xf32> -> vector<16x128xf32>
    %13 = vector.broadcast %11 : vector<1x128xf32> to vector<16x128xf32>
    %14 = arith.addf %12, %13 : vector<16x128xf32>
    %cst_13 = arith.constant 0.000000e+00 : f32
    %15 = vector.broadcast %cst_13 : f32 to vector<16x128xf32>
    %16 = arith.maximumf %14, %15 : vector<16x128xf32>
    %17 = arith.truncf %16 : vector<16x128xf32> to vector<16x128xbf16>
    %c0_14 = arith.constant 0 : index
    %c0_15 = arith.constant 0 : index
    %18 = vector.load %arg6[%c0_14, %c0_15] : memref<128x8xbf16, #tpu.memory_space<vmem>>, vector<128x8xbf16>
    %c0_16 = arith.constant 0 : index
    %c0_17 = arith.constant 0 : index
    %19 = vector.load %arg7[%c0_16, %c0_17] : memref<1x8xf32, #tpu.memory_space<vmem>>, vector<1x8xf32>
    %cst_18 = arith.constant dense<0.000000e+00> : vector<16x8xf32>
    %20 = tpu.matmul %17, %18, %cst_18 {dimension_numbers = #tpu.dot_dimension_numbers<[1], [0], [0], [1], [0, 0, 1, 1], [], []>} : vector<16x128xbf16>, vector<128x8xbf16>, vector<16x8xf32> -> vector<16x8xf32>
    %21 = vector.broadcast %19 : vector<1x8xf32> to vector<16x8xf32>
    %22 = arith.addf %20, %21 : vector<16x8xf32>
    %23 = arith.negf %22 : vector<16x8xf32>
    %24 = math.exp %23 : vector<16x8xf32>
    %cst_19 = arith.constant 1.000000e+00 : f32
    %25 = vector.broadcast %cst_19 : f32 to vector<16x8xf32>
    %26 = arith.addf %25, %24 : vector<16x8xf32>
    %27 = arith.divf %25, %26 : vector<16x8xf32>
    %c0_20 = arith.constant 0 : index
    %c0_21 = arith.constant 0 : index
    %28 = vector.load %arg9[%c0_20, %c0_21] : memref<16x8xf32, #tpu.memory_space<vmem>>, vector<16x8xf32>
    tpu.vector_store %arg9[%c0_20, %c0_21], %27 {strides = array<i32>} : memref<16x8xf32, #tpu.memory_space<vmem>>, vector<16x8xf32>,
    return
  }
  func.func @transform_0(%arg0: i32) -> (i32, i32) {
    %c0_i32 = arith.constant 0 : i32
    %c0_i32_0 = arith.constant 0 : i32
    return %arg0, %c0_i32 : i32, i32
  }
  func.func @transform_1(%arg0: i32) -> (i32, i32) {
    %c0_i32 = arith.constant 0 : i32
    %c0_i32_0 = arith.constant 0 : i32
    %c0_i32_1 = arith.constant 0 : i32
    return %c0_i32, %c0_i32_0 : i32, i32
  }
  func.func @transform_2(%arg0: i32) -> (i32, i32) {
    %c0_i32 = arith.constant 0 : i32
    %c0_i32_0 = arith.constant 0 : i32
    %c0_i32_1 = arith.constant 0 : i32
    return %c0_i32, %c0_i32_0 : i32, i32
  }
  func.func @transform_3(%arg0: i32) -> (i32, i32) {
    %c0_i32 = arith.constant 0 : i32
    %c0_i32_0 = arith.constant 0 : i32
    %c0_i32_1 = arith.constant 0 : i32
    return %c0_i32, %c0_i32_0 : i32, i32
  }
  func.func @transform_4(%arg0: i32) -> (i32, i32) {
    %c0_i32 = arith.constant 0 : i32
    %c0_i32_0 = arith.constant 0 : i32
    %c0_i32_1 = arith.constant 0 : i32
    return %c0_i32, %c0_i32_0 : i32, i32
  }
  func.func @transform_5(%arg0: i32) -> (i32, i32) {
    %c0_i32 = arith.constant 0 : i32
    %c0_i32_0 = arith.constant 0 : i32
    %c0_i32_1 = arith.constant 0 : i32
    return %c0_i32, %c0_i32_0 : i32, i32
  }
  func.func @transform_6(%arg0: i32) -> (i32, i32) {
    %c0_i32 = arith.constant 0 : i32
    %c0_i32_0 = arith.constant 0 : i32
    %c0_i32_1 = arith.constant 0 : i32
    return %c0_i32, %c0_i32_0 : i32, i32
  }
  func.func @transform_7(%arg0: i32) -> (i32, i32) {
    %c0_i32 = arith.constant 0 : i32
    %c0_i32_0 = arith.constant 0 : i32
    return %arg0, %c0_i32 : i32, i32
  }
  func.func @transform_8(%arg0: i32) -> (i32, i32) {
    %c0_i32 = arith.constant 0 : i32
    %c0_i32_0 = arith.constant 0 : i32
    return %arg0, %c0_i32 : i32, i32
  }
}

</mosaic_0001>

<llo_original>
// kernel: _forward.1
$region0: #{_forward.1}
  #allocation0 [shape = 'u32[]', space=smem, size = 0x4, offset = 0x4, fixed_abs, tag = 'smem constant byte address 0x4 - core index']
  #allocation1 [shape = 'u32[72,128]{1,0:T(1,128)}', space=vmem, size = 0x9000, scoped, tag = 'internal scratch']
  %s0 = inlined_call_operand.vmem [shape: bf16[16,128], index: 0, kind: input, shape index: {}]
  %s1 = inlined_call_operand.vmem [shape: bf16[128,256], index: 1, kind: input, shape index: {}]
  %s2 = inlined_call_operand.vmem [shape: f32[1,256], index: 2, kind: input, shape index: {}]
  %s3 = inlined_call_operand.hbm [shape: bf16[256,128], index: 3, kind: input, shape index: {}]
  %s4 = inlined_call_operand.vmem [shape: f32[1,128], index: 4, kind: input, shape index: {}]
  %s5 = inlined_call_operand.vmem [shape: bf16[128,8], index: 5, kind: input, shape index: {}]
  %s6 = inlined_call_operand.vmem [shape: f32[1,8], index: 6, kind: input, shape index: {}]
  %s7 = inlined_call_operand.vmem [shape: f32[16,256], index: 7, kind: output, shape index: {0}]
  %s8 = inlined_call_operand.vmem [shape: f32[16,8], index: 8, kind: output, shape index: {1}]
  %9 = xla_tuple %s7, %s8
  %s10 = sld [smem:[#allocation0]]
  $region50: #{_forward.1} parent=0
    _
  %s12 = ssub.s32 1, %s10
  %s13 = scalar_select 0, %s12, %s10
  $region1: #{_forward.1} parent=0
    #allocation2 [shape = 'u8[65536]{0}', space=vmem, size = 0x10000, scoped, tag = 'input window, operand 3, single buffered']
    #allocation3 [shape = 's32[1]{0}', space=sflag, size = 0x4, scoped, tag = 'scoped memory for _forward.1']
    %14 = vsyncpa [#allocation3], 0
    // Predicated region
    $region2: #{_forward.1} parent=1 // pred_check
      _
    $region3: #{_forward.1} parent=1 // pred_check_branch
      %16 = sbr.rel (0) target = $region5
    $region4: #{_forward.1} parent=1 // pred_region
      _
    $region5: #{_forward.1} parent=1 // pred_fallthru
      _
    // Predicated region
    $region6: #{_forward.1} parent=1 // pred_check
      _
    $region7: #{_forward.1} parent=1 // pred_check_branch
      %18 = sbr.rel (0) target = $region9
    $region8: #{_forward.1} parent=1 // pred_region
      _
    $region9: #{_forward.1} parent=1 // pred_fallthru
      _
    // Predicated region
    $region10: #{_forward.1} parent=1 // pred_check
      _
    $region11: #{_forward.1} parent=1 // pred_check_branch
      %20 = sbr.rel (0) target = $region13
    $region12: #{_forward.1} parent=1 // pred_region
      _
    $region13: #{_forward.1} parent=1 // pred_fallthru
      _
    // Predicated region
    $region14: #{_forward.1} parent=1 // pred_check
      _
    $region15: #{_forward.1} parent=1 // pred_check_branch
      %22 = sbr.rel (0) target = $region17
    $region16: #{_forward.1} parent=1 // pred_region
      %24 = vsyncadd [#allocation3], 0
      %s25 = sshll.u32 %s3, 4
      %s26 = int_to_ptr.hbm [resolvable:$true] %s25
      %s27 = sshll.u32 [#allocation2], 4
      %s28 = int_to_ptr.vmem [resolvable:$true] %s27
      %33 = dma.hbm_to_vmem [thread:$0]  %s26, 2048, %s28, [#allocation3], 64, 64, 4
    $region17: #{_forward.1} parent=1 // pred_fallthru
      _
    // Predicated region
    $region18: #{_forward.1} parent=1 // pred_check
      _
    $region19: #{_forward.1} parent=1 // pred_check_branch
      %35 = sbr.rel (0) target = $region21
    $region20: #{_forward.1} parent=1 // pred_region
      _
    $region21: #{_forward.1} parent=1 // pred_fallthru
      _
    // Predicated region
    $region22: #{_forward.1} parent=1 // pred_check
      _
    $region23: #{_forward.1} parent=1 // pred_check_branch
      %37 = sbr.rel (0) target = $region25
    $region24: #{_forward.1} parent=1 // pred_region
      _
    $region25: #{_forward.1} parent=1 // pred_fallthru
      _
    // Predicated region
    $region26: #{_forward.1} parent=1 // pred_check
      _
    $region27: #{_forward.1} parent=1 // pred_check_branch
      %39 = sbr.rel (0) target = $region29
    $region28: #{_forward.1} parent=1 // pred_region
      _
    $region29: #{_forward.1} parent=1 // pred_fallthru
      _
    // Predicated region
    $region30: #{_forward.1} parent=1 // pred_check
      _
    $region31: #{_forward.1} parent=1 // pred_check_branch
      %41 = sbr.rel (0) target = $region33
    $region32: #{_forward.1} parent=1 // pred_region
      %43 = dma.done [#allocation3], 2048
    $region33: #{_forward.1} parent=1 // pred_fallthru
      _
    %v44 = vld [vmem:[%s0] sm:$0xf]
    %v45 = vld [vmem:[%s0 + $0x4] sm:$0xf]
    %v46 = vld [vmem:[%s1] sm:$0xff]
    %v47 = vld [vmem:[%s1 + $0x8] sm:$0xff]
    %v48 = vld [vmem:[%s1 + $0x10] sm:$0xff]
    %v49 = vld [vmem:[%s1 + $0x18] sm:$0xff]
    %v50 = vld [vmem:[%s1 + $0x20] sm:$0xff]
    %v51 = vld [vmem:[%s1 + $0x28] sm:$0xff]
    %v52 = vld [vmem:[%s1 + $0x30] sm:$0xff]
    %v53 = vld [vmem:[%s1 + $0x38] sm:$0xff]
    %v54 = vld [vmem:[%s1 + $0x40] sm:$0xff]
    %v55 = vld [vmem:[%s1 + $0x48] sm:$0xff]
    %v56 = vld [vmem:[%s1 + $0x50] sm:$0xff]
    %v57 = vld [vmem:[%s1 + $0x58] sm:$0xff]
    %v58 = vld [vmem:[%s1 + $0x60] sm:$0xff]
    %v59 = vld [vmem:[%s1 + $0x68] sm:$0xff]
    %v60 = vld [vmem:[%s1 + $0x70] sm:$0xff]
    %v61 = vld [vmem:[%s1 + $0x78] sm:$0xff]
    %v62 = vld [vmem:[%s2] sm:$0x3]
    %v64 = vperm.slane %v62, 0
    %v65 = vperm.slane %v62, 1
    %v70 = vunpack.c.l.b16 %v44
    %v71 = vunpack.c.l.b16 %v45
    %v72 = vpack.c.b16 %v71, %v70
    %v90 = vunpack.c.l.b16 %v46
    %v91 = vunpack.c.h.b16 %v46
    %v92 = vunpack.c.l.b16 %v47
    %v93 = vunpack.c.h.b16 %v47
    %v94 = vunpack.c.l.b16 %v48
    %v95 = vunpack.c.h.b16 %v48
    %v96 = vunpack.c.l.b16 %v49
    %v97 = vunpack.c.h.b16 %v49
    %v98 = vunpack.c.l.b16 %v50
    %v99 = vunpack.c.h.b16 %v50
    %v100 = vunpack.c.l.b16 %v51
    %v101 = vunpack.c.h.b16 %v51
    %v102 = vunpack.c.l.b16 %v52
    %v103 = vunpack.c.h.b16 %v52
    %v104 = vunpack.c.l.b16 %v53
    %v105 = vunpack.c.h.b16 %v53
    %v106 = vunpack.c.l.b16 %v54
    %v107 = vunpack.c.h.b16 %v54
    %v108 = vunpack.c.l.b16 %v55
    %v109 = vunpack.c.h.b16 %v55
    %v110 = vunpack.c.l.b16 %v56
    %v111 = vunpack.c.h.b16 %v56
    %v112 = vunpack.c.l.b16 %v57
    %v113 = vunpack.c.h.b16 %v57
    %v114 = vunpack.c.l.b16 %v58
    %v115 = vunpack.c.h.b16 %v58
    %v116 = vunpack.c.l.b16 %v59
    %v117 = vunpack.c.h.b16 %v59
    %v118 = vunpack.c.l.b16 %v60
    %v119 = vunpack.c.h.b16 %v60
    %v120 = vunpack.c.l.b16 %v61
    %v121 = vunpack.c.h.b16 %v61
    %v122 = vpack.c.b16 %v92, %v90
    %v123 = vpack.c.b16 %v93, %v91
    %v124 = vpack.c.b16 %v96, %v94
    %v125 = vpack.c.b16 %v97, %v95
    %v126 = vpack.c.b16 %v100, %v98
    %v127 = vpack.c.b16 %v101, %v99
    %v128 = vpack.c.b16 %v104, %v102
    %v129 = vpack.c.b16 %v105, %v103
    %v130 = vpack.c.b16 %v108, %v106
    %v131 = vpack.c.b16 %v109, %v107
    %v132 = vpack.c.b16 %v112, %v110
    %v133 = vpack.c.b16 %v113, %v111
    %v134 = vpack.c.b16 %v116, %v114
    %v135 = vpack.c.b16 %v117, %v115
    %v136 = vpack.c.b16 %v120, %v118
    %v137 = vpack.c.b16 %v121, %v119
    %154 = vmatpush.bf16.msra.mxu0 %v136
    %155 = vmatpush.bf16.msra.mxu0 %v134
    %156 = vmatpush.bf16.msra.mxu0 %v132
    %157 = vmatpush.bf16.msra.mxu0 %v130
    %158 = vmatpush.bf16.msra.mxu0 %v128
    %159 = vmatpush.bf16.msra.mxu0 %v126
    %160 = vmatpush.bf16.msra.mxu0 %v124
    %161 = vmatpush.bf16.msra.mxu0 %v122
    %162 = vmatmul.bf16.gmra.mxu0 %v72
    %v163 = vpop.f32.mrf.mxu0
    %v164 = vadd.f32 %v64, %v163
    %v165 = vpop.f32.mrf.mxu0
    %v166 = vadd.f32 %v64, %v165
    %167 = vdwg.mxu0
    %168 = vmatpush.bf16.msra.mxu0 %v137
    %169 = vmatpush.bf16.msra.mxu0 %v135
    %170 = vmatpush.bf16.msra.mxu0 %v133
    %171 = vmatpush.bf16.msra.mxu0 %v131
    %172 = vmatpush.bf16.msra.mxu0 %v129
    %173 = vmatpush.bf16.msra.mxu0 %v127
    %174 = vmatpush.bf16.msra.mxu0 %v125
    %175 = vmatpush.bf16.msra.mxu0 %v123
    %176 = vmatmul.bf16.gmra.mxu0 %v72
    %v177 = vpop.f32.mrf.mxu0
    %v178 = vadd.f32 %v65, %v177
    %v179 = vpop.f32.mrf.mxu0
    %v180 = vadd.f32 %v65, %v179
    %181 = vdwg.mxu0
    %v182 = vmax.f32 %v164, 0.0
    %v183 = vmax.f32 %v178, 0.0
    %v184 = vmax.f32 %v166, 0.0
    %v185 = vmax.f32 %v180, 0.0
    %186 = vst [vmem:[%s7] sm:$0xff] %v182
    %187 = vst [vmem:[%s7 + $0x8] sm:$0xff] %v183
    %188 = vst [vmem:[%s7 + $0x10] sm:$0xff] %v184
    %189 = vst [vmem:[%s7 + $0x18] sm:$0xff] %v185
    %v190 = vpack.c.bf16 %v184, %v182
    %v191 = vpack.c.bf16 %v185, %v183
    %v192 = vld [vmem:[#allocation2] sm:$0xf]
    %v193 = vld [vmem:[#allocation2 + $0x4] sm:$0xf]
    %v194 = vld [vmem:[#allocation2 + $0x8] sm:$0xf]
    %v195 = vld [vmem:[#allocation2 + $0xc] sm:$0xf]
    %v196 = vld [vmem:[#allocation2 + $0x10] sm:$0xf]
    %v197 = vld [vmem:[#allocation2 + $0x14] sm:$0xf]
    %v198 = vld [vmem:[#allocation2 + $0x18] sm:$0xf]
    %v199 = vld [vmem:[#allocation2 + $0x1c] sm:$0xf]
    %v200 = vld [vmem:[#allocation2 + $0x20] sm:$0xf]
    %v201 = vld [vmem:[#allocation2 + $0x24] sm:$0xf]
    %v202 = vld [vmem:[#allocation2 + $0x28] sm:$0xf]
    %v203 = vld [vmem:[#allocation2 + $0x2c] sm:$0xf]
    %v204 = vld [vmem:[#allocation2 + $0x30] sm:$0xf]
    %v205 = vld [vmem:[#allocation2 + $0x34] sm:$0xf]
    %v206 = vld [vmem:[#allocation2 + $0x38] sm:$0xf]
    %v207 = vld [vmem:[#allocation2 + $0x3c] sm:$0xf]
    %v208 = vld [vmem:[#allocation2 + $0x40] sm:$0xf]
    %v209 = vld [vmem:[#allocation2 + $0x44] sm:$0xf]
    %v210 = vld [vmem:[#allocation2 + $0x48] sm:$0xf]
    %v211 = vld [vmem:[#allocation2 + $0x4c] sm:$0xf]
    %v212 = vld [vmem:[#allocation2 + $0x50] sm:$0xf]
    %v213 = vld [vmem:[#allocation2 + $0x54] sm:$0xf]
    %v214 = vld [vmem:[#allocation2 + $0x58] sm:$0xf]
    %v215 = vld [vmem:[#allocation2 + $0x5c] sm:$0xf]
    %v216 = vld [vmem:[#allocation2 + $0x60] sm:$0xf]
    %v217 = vld [vmem:[#allocation2 + $0x64] sm:$0xf]
    %v218 = vld [vmem:[#allocation2 + $0x68] sm:$0xf]
    %v219 = vld [vmem:[#allocation2 + $0x6c] sm:$0xf]
    %v220 = vld [vmem:[#allocation2 + $0x70] sm:$0xf]
    %v221 = vld [vmem:[#allocation2 + $0x74] sm:$0xf]
    %v222 = vld [vmem:[#allocation2 + $0x78] sm:$0xf]
    %v223 = vld [vmem:[#allocation2 + $0x7c] sm:$0xf]
    %v224 = vld [vmem:[%s4] sm:$0x1]
    %v226 = vperm.slane %v224, 0
    %v260 = vunpack.c.l.b16 %v192
    %v261 = vunpack.c.l.b16 %v193
    %v262 = vunpack.c.l.b16 %v194
    %v263 = vunpack.c.l.b16 %v195
    %v264 = vunpack.c.l.b16 %v196
    %v265 = vunpack.c.l.b16 %v197
    %v266 = vunpack.c.l.b16 %v198
    %v267 = vunpack.c.l.b16 %v199
    %v268 = vunpack.c.l.b16 %v200
    %v269 = vunpack.c.l.b16 %v201
    %v270 = vunpack.c.l.b16 %v202
    %v271 = vunpack.c.l.b16 %v203
    %v272 = vunpack.c.l.b16 %v204
    %v273 = vunpack.c.l.b16 %v205
    %v274 = vunpack.c.l.b16 %v206
    %v275 = vunpack.c.l.b16 %v207
    %v276 = vunpack.c.l.b16 %v208
    %v277 = vunpack.c.l.b16 %v209
    %v278 = vunpack.c.l.b16 %v210
    %v279 = vunpack.c.l.b16 %v211
    %v280 = vunpack.c.l.b16 %v212
    %v281 = vunpack.c.l.b16 %v213
    %v282 = vunpack.c.l.b16 %v214
    %v283 = vunpack.c.l.b16 %v215
    %v284 = vunpack.c.l.b16 %v216
    %v285 = vunpack.c.l.b16 %v217
    %v286 = vunpack.c.l.b16 %v218
    %v287 = vunpack.c.l.b16 %v219
    %v288 = vunpack.c.l.b16 %v220
    %v289 = vunpack.c.l.b16 %v221
    %v290 = vunpack.c.l.b16 %v222
    %v291 = vunpack.c.l.b16 %v223
    %v292 = vpack.c.b16 %v261, %v260
    %v293 = vpack.c.b16 %v263, %v262
    %v294 = vpack.c.b16 %v265, %v264
    %v295 = vpack.c.b16 %v267, %v266
    %v296 = vpack.c.b16 %v269, %v268
    %v297 = vpack.c.b16 %v271, %v270
    %v298 = vpack.c.b16 %v273, %v272
    %v299 = vpack.c.b16 %v275, %v274
    %v300 = vpack.c.b16 %v277, %v276
    %v301 = vpack.c.b16 %v279, %v278
    %v302 = vpack.c.b16 %v281, %v280
    %v303 = vpack.c.b16 %v283, %v282
    %v304 = vpack.c.b16 %v285, %v284
    %v305 = vpack.c.b16 %v287, %v286
    %v306 = vpack.c.b16 %v289, %v288
    %v307 = vpack.c.b16 %v291, %v290
    %324 = vmatpush.bf16.msra.mxu0 %v299
    %325 = vmatpush.bf16.msra.mxu0 %v298
    %326 = vmatpush.bf16.msra.mxu0 %v297
    %327 = vmatpush.bf16.msra.mxu0 %v296
    %328 = vmatpush.bf16.msra.mxu0 %v295
    %329 = vmatpush.bf16.msra.mxu0 %v294
    %330 = vmatpush.bf16.msra.mxu0 %v293
    %331 = vmatpush.bf16.msra.mxu0 %v292
    %332 = vmatmul.bf16.gmra.mxu0 %v190
    %v333 = vpop.f32.mrf.mxu0
    %v334 = vadd.f32 %v226, %v333
    %v335 = vpop.f32.mrf.mxu0
    %v336 = vadd.f32 %v226, %v335
    %337 = vdwg.mxu0
    %338 = vmatpush.bf16.msra.mxu0 %v307
    %339 = vmatpush.bf16.msra.mxu0 %v306
    %340 = vmatpush.bf16.msra.mxu0 %v305
    %341 = vmatpush.bf16.msra.mxu0 %v304
    %342 = vmatpush.bf16.msra.mxu0 %v303
    %343 = vmatpush.bf16.msra.mxu0 %v302
    %344 = vmatpush.bf16.msra.mxu0 %v301
    %345 = vmatpush.bf16.msra.mxu0 %v300
    %346 = vmatmul.bf16.gmra.mxu0 %v191
    %v347 = vpop.f32.mrf.mxu0
    %v348 = vadd.f32 %v334, %v347
    %v349 = vpop.f32.mrf.mxu0
    %v350 = vadd.f32 %v336, %v349
    %351 = vdwg.mxu0
    %v352 = vmax.f32 %v348, 0.0
    %v353 = vmax.f32 %v350, 0.0
    %v354 = vpack.c.bf16 %v353, %v352
    %v355 = vld [vmem:[%s5] sm:$0xf]
    %v356 = vld [vmem:[%s5 + $0x4] sm:$0xf]
    %v357 = vld [vmem:[%s5 + $0x8] sm:$0xf]
    %v358 = vld [vmem:[%s5 + $0xc] sm:$0xf]
    %v359 = vld [vmem:[%s5 + $0x10] sm:$0xf]
    %v360 = vld [vmem:[%s5 + $0x14] sm:$0xf]
    %v361 = vld [vmem:[%s5 + $0x18] sm:$0xf]
    %v362 = vld [vmem:[%s5 + $0x1c] sm:$0xf]
    %v363 = vld [vmem:[%s5 + $0x20] sm:$0xf]
    %v364 = vld [vmem:[%s5 + $0x24] sm:$0xf]
    %v365 = vld [vmem:[%s5 + $0x28] sm:$0xf]
    %v366 = vld [vmem:[%s5 + $0x2c] sm:$0xf]
    %v367 = vld [vmem:[%s5 + $0x30] sm:$0xf]
    %v368 = vld [vmem:[%s5 + $0x34] sm:$0xf]
    %v369 = vld [vmem:[%s5 + $0x38] sm:$0xf]
    %v370 = vld [vmem:[%s5 + $0x3c] sm:$0xf]
    %v371 = vld [vmem:[%s6] sm:$0x1]
    %v373 = vperm.slane %v371, 0
    %v391 = vunpack.c.l.b16 %v355
    %v392 = vunpack.c.l.b16 %v356
    %v393 = vunpack.c.l.b16 %v357
    %v394 = vunpack.c.l.b16 %v358
    %v395 = vunpack.c.l.b16 %v359
    %v396 = vunpack.c.l.b16 %v360
    %v397 = vunpack.c.l.b16 %v361
    %v398 = vunpack.c.l.b16 %v362
    %v399 = vunpack.c.l.b16 %v363
    %v400 = vunpack.c.l.b16 %v364
    %v401 = vunpack.c.l.b16 %v365
    %v402 = vunpack.c.l.b16 %v366
    %v403 = vunpack.c.l.b16 %v367
    %v404 = vunpack.c.l.b16 %v368
    %v405 = vunpack.c.l.b16 %v369
    %v406 = vunpack.c.l.b16 %v370
    %v407 = vpack.c.b16 %v392, %v391
    %v408 = vpack.c.b16 %v394, %v393
    %v409 = vpack.c.b16 %v396, %v395
    %v410 = vpack.c.b16 %v398, %v397
    %v411 = vpack.c.b16 %v400, %v399
    %v412 = vpack.c.b16 %v402, %v401
    %v413 = vpack.c.b16 %v404, %v403
    %v414 = vpack.c.b16 %v406, %v405
    %423 = vmatpush.bf16.msra.mxu0 %v414
    %424 = vmatpush.bf16.msra.mxu0 %v413
    %425 = vmatpush.bf16.msra.mxu0 %v412
    %426 = vmatpush.bf16.msra.mxu0 %v411
    %427 = vmatpush.bf16.msra.mxu0 %v410
    %428 = vmatpush.bf16.msra.mxu0 %v409
    %429 = vmatpush.bf16.msra.mxu0 %v408
    %430 = vmatpush.bf16.msra.mxu0 %v407
    %431 = vmatmul.bf16.gmra.mxu0 %v354
    %v432 = vpop.f32.mrf.mxu0
    %v433 = vadd.f32 %v373, %v432
    %v434 = vpop.f32.mrf.mxu0
    %v435 = vadd.f32 %v373, %v434
    %436 = vdwg.mxu0
    %v437 = vxor.u32 %v433, 2147483648
    %v438 = vxor.u32 %v435, 2147483648
    %v439 = vmul.f32 %v437, 1.442695
    %v440 = vpow.pop %v439
    %v441 = vmul.f32 %v438, 1.442695
    %v442 = vpow.pop %v441
    %v443 = vadd.f32 %v440, 1.0
    %v444 = vadd.f32 %v442, 1.0
    %v445 = vrcp.pop %v443
    %v446 = vmul.f32 %v443, %v445
    %v447 = vsub.f32 1.0, %v446
    %v448 = vmul.f32 %v445, %v447
    %v449 = vadd.f32 %v445, %v448
    %vm450 = vweird.f32 %v443
    %vm451 = vweird.f32 %v445
    %vm452 = vmor %vm450, %vm451
    %v453 = vsel %vm452, %v445, %v449
    %v454 = vand.u32 2147483647, %v443
    %vm455 = vcmp.eq.f32.partialorder %v454, 8.507059e+37
    %v456 = vand.u32 %v443, 2147483648
    %v457 = vor.u32 1.1754944e-38, %v456
    %v458 = vsel %vm455, %v457, %v453
    %v459 = vmul.f32 1.0, %v458
    %v460 = vrcp.pop %v444
    %v461 = vmul.f32 %v444, %v460
    %v462 = vsub.f32 1.0, %v461
    %v463 = vmul.f32 %v460, %v462
    %v464 = vadd.f32 %v460, %v463
    %vm465 = vweird.f32 %v444
    %vm466 = vweird.f32 %v460
    %vm467 = vmor %vm465, %vm466
    %v468 = vsel %vm467, %v460, %v464
    %v469 = vand.u32 2147483647, %v444
    %vm470 = vcmp.eq.f32.partialorder %v469, 8.507059e+37
    %v471 = vand.u32 %v444, 2147483648
    %v472 = vor.u32 1.1754944e-38, %v471
    %v473 = vsel %vm470, %v472, %v468
    %v474 = vmul.f32 1.0, %v473
    %vm475 = vcmask 64512
    %476 = vst.msk [vmem:[%s8] sm:$0xff] %vm475, %v459
    %477 = vst.msk [vmem:[%s8 + $0x8] sm:$0xff] %vm475, %v474
    // Predicated region
    $region34: #{_forward.1} parent=1 // pred_check
      _
    $region35: #{_forward.1} parent=1 // pred_check_branch
      %479 = sbr.rel (0) target = $region37
    $region36: #{_forward.1} parent=1 // pred_region
      _
    $region37: #{_forward.1} parent=1 // pred_fallthru
      _
    // Predicated region
    $region38: #{_forward.1} parent=1 // pred_check
      _
    $region39: #{_forward.1} parent=1 // pred_check_branch
      %481 = sbr.rel (0) target = $region41
    $region40: #{_forward.1} parent=1 // pred_region
      _
    $region41: #{_forward.1} parent=1 // pred_fallthru
      _
    // Predicated region
    $region42: #{_forward.1} parent=1 // pred_check
      _
    $region43: #{_forward.1} parent=1 // pred_check_branch
      %483 = sbr.rel (0) target = $region45
    $region44: #{_forward.1} parent=1 // pred_region
      _
    $region45: #{_forward.1} parent=1 // pred_fallthru
      _
    // Predicated region
    $region46: #{_forward.1} parent=1 // pred_check
      _
    $region47: #{_forward.1} parent=1 // pred_check_branch
      %485 = sbr.rel (0) target = $region49
    $region48: #{_forward.1} parent=1 // pred_region
      _
    $region49: #{_forward.1} parent=1 // pred_fallthru
      _
    %486 = vsyncpa [#allocation3], 1

</llo_original>
